<compile_context>
chip_gen: v5e
topology: v5e:2x2
jax: 0.10.0
libtpu: 0.0.40
codegen_flags: <defaults>
</compile_context>

<pallas_src>
import jax
import jax.numpy as jnp
from jax.experimental import pallas as pl
from jax.experimental.pallas import tpu as pltpu

LOG_STD_MAX = 2.0
LOG_STD_MIN = -20.0

_PACKED_WIDTH = 128  # lane-dense packed output width (act_dim + 1 must fit)


def _round_up(x, m):
    return ((x + m - 1) // m) * m


def _actor_kernel(obs_ref, eps_ref, w1_ref, w2_ref, wmu_ref, wls_ref,
                  small_ref, out_ref):
    H = w1_ref.shape[1]
    A = wmu_ref.shape[1]

    x = obs_ref[...]          # (TB, obs_dim)
    eps = eps_ref[...]        # (TB, A)

    # Packed small params: row 0 = b1, 1 = b2, 2 = b_mu, 3 = b_log_std,
    # 4 = act_limit (all zero-padded to the packed width).
    b1 = small_ref[0:1, :H]
    b2 = small_ref[1:2, :H]
    b_mu = small_ref[2:3, :A]
    b_ls = small_ref[3:4, :A]
    act_limit = small_ref[4:5, :A]

    # ---- BasicMLP: obs_dim -> H -> H (ReLU), then split mu / log_std heads.
    h1 = jnp.maximum(
        jnp.dot(x, w1_ref[...], preferred_element_type=jnp.float32) + b1, 0.0)
    h2 = jnp.maximum(
        jnp.dot(h1, w2_ref[...], preferred_element_type=jnp.float32) + b2, 0.0)

    mu = jnp.dot(h2, wmu_ref[...], preferred_element_type=jnp.float32) + b_mu
    log_std = jnp.dot(h2, wls_ref[...], preferred_element_type=jnp.float32) + b_ls
    log_std = jnp.clip(log_std, LOG_STD_MIN, LOG_STD_MAX)
    std = jnp.exp(log_std)

    # rsample: pi = mu + std * eps (eps supplied from host for determinism).
    pi = mu + std * eps

    # Fused single reduction:
    #   Normal(mu, std).log_prob(pi) with z = (pi - mu)/std == eps exactly,
    #   minus the tanh-squash correction 2*(log 2 - pi - softplus(-2*pi)).
    softplus_neg2pi = jnp.logaddexp(0.0, -2.0 * pi)
    per_lane = (-0.5 * (eps * eps) - log_std - 0.5 * jnp.log(2.0 * jnp.pi)
                - 2.0 * (jnp.log(2.0) - pi - softplus_neg2pi))
    logp = jnp.sum(per_lane, axis=-1, keepdims=True)        # (TB, 1)

    act = act_limit * jnp.tanh(pi)                           # (TB, A)

    # Lane-dense packed output: [action | logp | zeros], one full-width store.
    tb, w_out = out_ref.shape
    pad = jnp.zeros((tb, w_out - A - 1), dtype=out_ref.dtype)
    out_ref[...] = jnp.concatenate(
        [act.astype(out_ref.dtype), logp.astype(out_ref.dtype), pad], axis=-1)


def squashed_gaussian_actor(obs, eps, w1, b1, w2, b2, w_mu, b_mu, w_ls, b_ls,
                            act_limit, *, block_b=256):
    """Returns (pi_action [B, act_dim], logp_pi [B])."""
    B, obs_dim = obs.shape
    H = w1.shape[1]
    A = w_mu.shape[1]
    assert A + 1 <= _PACKED_WIDTH, "act_dim too large for packed output lane"

    # Batch tile: multiple of 8 sublanes; pad the batch so the grid is exact.
    TB = min(block_b, _round_up(B, 8))
    Bp = _round_up(B, TB)
    if Bp != B:
        obs = jnp.pad(obs, ((0, Bp - B), (0, 0)))
        eps = jnp.pad(eps, ((0, Bp - B), (0, 0)))

    # Pack all small vectors into a single VMEM-resident array.
    P = max(H, A)
    small = jnp.zeros((8, P), jnp.float32)
    small = small.at[0, :H].set(b1)
    small = small.at[1, :H].set(b2)
    small = small.at[2, :A].set(b_mu)
    small = small.at[3, :A].set(b_ls)
    small = small.at[4, :A].set(act_limit)

    grid = (Bp // TB,)
    packed = pl.pallas_call(
        _actor_kernel,
        out_shape=jax.ShapeDtypeStruct((Bp, _PACKED_WIDTH), jnp.float32),
        grid=grid,
        in_specs=[
            pl.BlockSpec((TB, obs_dim), lambda i: (i, 0)),   # obs (streamed)
            pl.BlockSpec((TB, A), lambda i: (i, 0)),         # eps (streamed)
            pl.BlockSpec((obs_dim, H), lambda i: (0, 0)),    # w1 (resident)
            pl.BlockSpec((H, H), lambda i: (0, 0)),          # w2 (resident)
            pl.BlockSpec((H, A), lambda i: (0, 0)),          # w_mu (resident)
            pl.BlockSpec((H, A), lambda i: (0, 0)),          # w_log_std (resident)
            pl.BlockSpec((8, P), lambda i: (0, 0)),          # packed biases/limit
        ],
        out_specs=pl.BlockSpec((TB, _PACKED_WIDTH), lambda i: (i, 0)),
        compiler_params=pltpu.CompilerParams(
            dimension_semantics=("parallel",)),
    )(obs, eps, w1, w2, w_mu, w_ls, small)

    packed = packed[:B]
    pi_action = packed[:, :A]
    logp_pi = packed[:, A]
    return pi_action, logp_pi


def _reference(obs, eps, w1, b1, w2, b2, w3, b3, act_limit):
    """Pure-JAX reference mirroring the PyTorch forward (with_logprob=True)."""
    h = jax.nn.relu(obs @ w1 + b1)
    h = jax.nn.relu(h @ w2 + b2)
    out = h @ w3 + b3
    A = act_limit.shape[0]
    mu, log_std = out[:, :A], out[:, A:]
    log_std = jnp.clip(log_std, LOG_STD_MIN, LOG_STD_MAX)
    std = jnp.exp(log_std)
    pi = mu + std * eps
    logp = jnp.sum(-0.5 * ((pi - mu) / std) ** 2 - log_std
                   - 0.5 * jnp.log(2.0 * jnp.pi), axis=-1)
    logp -= jnp.sum(2.0 * (jnp.log(2.0) - pi - jax.nn.softplus(-2.0 * pi)),
                    axis=-1)
    return act_limit * jnp.tanh(pi), logp


if __name__ == "__main__":
    # Small shapes consistent with the module: obs_dim=16, hidden=(32,32), act_dim=4
    B, OBS_DIM, HIDDEN, ACT_DIM = 8, 16, 32, 4

    key = jax.random.PRNGKey(0)
    k_obs, k_eps, k1, k2, k3, kb1, kb2, kb3 = jax.random.split(key, 8)

    obs = jax.random.normal(k_obs, (B, OBS_DIM), dtype=jnp.float32)
    eps = jax.random.normal(k_eps, (B, ACT_DIM), dtype=jnp.float32)

    def linear_init(kw, kb, fan_in, fan_out):
        bound = 1.0 / jnp.sqrt(fan_in)
        w = jax.random.uniform(kw, (fan_in, fan_out), jnp.float32, -bound, bound)
        b = jax.random.uniform(kb, (fan_out,), jnp.float32, -bound, bound)
        return w, b

    w1, b1 = linear_init(k1, kb1, OBS_DIM, HIDDEN)
    w2, b2 = linear_init(k2, kb2, HIDDEN, HIDDEN)
    w3, b3 = linear_init(k3, kb3, HIDDEN, 2 * ACT_DIM)
    act_limit = jnp.full((ACT_DIM,), 1.5, dtype=jnp.float32)  # nn.Parameter(act_limit)

    # Split output head: lane-aligned mu / log_std heads (equivalent to chunk(2)).
    w_mu, w_ls = w3[:, :ACT_DIM], w3[:, ACT_DIM:]
    b_mu, b_ls = b3[:ACT_DIM], b3[ACT_DIM:]

    pi_action, logp_pi = squashed_gaussian_actor(
        obs, eps, w1, b1, w2, b2, w_mu, b_mu, w_ls, b_ls, act_limit)
    jax.block_until_ready((pi_action, logp_pi))

    ref_act, ref_logp = _reference(obs, eps, w1, b1, w2, b2, w3, b3, act_limit)
    assert pi_action.shape == (B, ACT_DIM) and logp_pi.shape == (B,)
    assert jnp.allclose(pi_action, ref_act, atol=1e-5, rtol=1e-5)
    assert jnp.allclose(logp_pi, ref_logp, atol=1e-4, rtol=1e-4)

    print("KERNEL_OK")
</pallas_src>

<mosaic_0001>
module attributes {stable_mosaic.version = 11 : i64} {
  func.func @_actor_kernel(%arg0: i32, %arg1: memref<8x16xf32, #tpu.memory_space<vmem>>, %arg2: memref<8x4xf32, #tpu.memory_space<vmem>>, %arg3: memref<16x32xf32, #tpu.memory_space<vmem>>, %arg4: memref<32x32xf32, #tpu.memory_space<vmem>>, %arg5: memref<32x4xf32, #tpu.memory_space<vmem>>, %arg6: memref<32x4xf32, #tpu.memory_space<vmem>>, %arg7: memref<8x32xf32, #tpu.memory_space<vmem>>, %arg8: memref<8x128xf32, #tpu.memory_space<vmem>>) attributes {dimension_semantics = [#tpu.dimension_semantics<parallel>], iteration_bounds = array<i64: 1>, scalar_prefetch = 0 : i64, scratch_operands = 0 : i64, tpu.core_type = #tpu.core_type<tc>, window_params = [{transform_indices = @transform_0, window_bounds = array<i64: 8, 16>}, {transform_indices = @transform_1, window_bounds = array<i64: 8, 4>}, {pipeline_mode = #tpu.pipeline_mode<synchronous>, transform_indices = @transform_2, window_bounds = array<i64: 16, 32>}, {pipeline_mode = #tpu.pipeline_mode<synchronous>, transform_indices = @transform_3, window_bounds = array<i64: 32, 32>}, {pipeline_mode = #tpu.pipeline_mode<synchronous>, transform_indices = @transform_4, window_bounds = array<i64: 32, 4>}, {pipeline_mode = #tpu.pipeline_mode<synchronous>, transform_indices = @transform_5, window_bounds = array<i64: 32, 4>}, {pipeline_mode = #tpu.pipeline_mode<synchronous>, transform_indices = @transform_6, window_bounds = array<i64: 8, 32>}, {transform_indices = @transform_7, window_bounds = array<i64: 8, 128>}]} {
    %c0 = arith.constant 0 : index
    %c0_0 = arith.constant 0 : index
    %0 = vector.load %arg1[%c0, %c0_0] : memref<8x16xf32, #tpu.memory_space<vmem>>, vector<8x16xf32>
    %c0_1 = arith.constant 0 : index
    %c0_2 = arith.constant 0 : index
    %1 = vector.load %arg2[%c0_1, %c0_2] : memref<8x4xf32, #tpu.memory_space<vmem>>, vector<8x4xf32>
    %c0_3 = arith.constant 0 : index
    %c0_4 = arith.constant 0 : index
    %2 = vector.load %arg7[%c0_3, %c0_4] : memref<8x32xf32, #tpu.memory_space<vmem>>, vector<1x32xf32>
    %c1 = arith.constant 1 : index
    %c0_5 = arith.constant 0 : index
    %3 = vector.load %arg7[%c1, %c0_5] : memref<8x32xf32, #tpu.memory_space<vmem>>, vector<1x32xf32>
    %c2 = arith.constant 2 : index
    %c0_6 = arith.constant 0 : index
    %4 = vector.load %arg7[%c2, %c0_6] : memref<8x32xf32, #tpu.memory_space<vmem>>, vector<1x4xf32>
    %c3 = arith.constant 3 : index
    %c0_7 = arith.constant 0 : index
    %5 = vector.load %arg7[%c3, %c0_7] : memref<8x32xf32, #tpu.memory_space<vmem>>, vector<1x4xf32>
    %c4 = arith.constant 4 : index
    %c0_8 = arith.constant 0 : index
    %6 = vector.load %arg7[%c4, %c0_8] : memref<8x32xf32, #tpu.memory_space<vmem>>, vector<1x4xf32>
    %c0_9 = arith.constant 0 : index
    %c0_10 = arith.constant 0 : index
    %7 = vector.load %arg3[%c0_9, %c0_10] : memref<16x32xf32, #tpu.memory_space<vmem>>, vector<16x32xf32>
    %cst = arith.constant dense<0.000000e+00> : vector<8x32xf32>
    %8 = tpu.matmul %0, %7, %cst {dimension_numbers = #tpu.dot_dimension_numbers<[1], [0], [0], [1], [0, 0, 1, 1], [], []>} : vector<8x16xf32>, vector<16x32xf32>, vector<8x32xf32> -> vector<8x32xf32>
    %9 = vector.broadcast %2 : vector<1x32xf32> to vector<8x32xf32>
    %10 = arith.addf %8, %9 : vector<8x32xf32>
    %cst_11 = arith.constant 0.000000e+00 : f32
    %11 = vector.broadcast %cst_11 : f32 to vector<8x32xf32>
    %12 = arith.maximumf %10, %11 : vector<8x32xf32>
    %c0_12 = arith.constant 0 : index
    %c0_13 = arith.constant 0 : index
    %13 = vector.load %arg4[%c0_12, %c0_13] : memref<32x32xf32, #tpu.memory_space<vmem>>, vector<32x32xf32>
    %cst_14 = arith.constant dense<0.000000e+00> : vector<8x32xf32>
    %14 = tpu.matmul %12, %13, %cst_14 {dimension_numbers = #tpu.dot_dimension_numbers<[1], [0], [0], [1], [0, 0, 1, 1], [], []>} : vector<8x32xf32>, vector<32x32xf32>, vector<8x32xf32> -> vector<8x32xf32>
    %15 = vector.broadcast %3 : vector<1x32xf32> to vector<8x32xf32>
    %16 = arith.addf %14, %15 : vector<8x32xf32>
    %cst_15 = arith.constant 0.000000e+00 : f32
    %17 = vector.broadcast %cst_15 : f32 to vector<8x32xf32>
    %18 = arith.maximumf %16, %17 : vector<8x32xf32>
    %c0_16 = arith.constant 0 : index
    %c0_17 = arith.constant 0 : index
    %19 = vector.load %arg5[%c0_16, %c0_17] : memref<32x4xf32, #tpu.memory_space<vmem>>, vector<32x4xf32>
    %cst_18 = arith.constant dense<0.000000e+00> : vector<8x4xf32>
    %20 = tpu.matmul %18, %19, %cst_18 {dimension_numbers = #tpu.dot_dimension_numbers<[1], [0], [0], [1], [0, 0, 1, 1], [], []>} : vector<8x32xf32>, vector<32x4xf32>, vector<8x4xf32> -> vector<8x4xf32>
    %21 = vector.broadcast %4 : vector<1x4xf32> to vector<8x4xf32>
    %22 = arith.addf %20, %21 : vector<8x4xf32>
    %c0_19 = arith.constant 0 : index
    %c0_20 = arith.constant 0 : index
    %23 = vector.load %arg6[%c0_19, %c0_20] : memref<32x4xf32, #tpu.memory_space<vmem>>, vector<32x4xf32>
    %cst_21 = arith.constant dense<0.000000e+00> : vector<8x4xf32>
    %24 = tpu.matmul %18, %23, %cst_21 {dimension_numbers = #tpu.dot_dimension_numbers<[1], [0], [0], [1], [0, 0, 1, 1], [], []>} : vector<8x32xf32>, vector<32x4xf32>, vector<8x4xf32> -> vector<8x4xf32>
    %25 = vector.broadcast %5 : vector<1x4xf32> to vector<8x4xf32>
    %26 = arith.addf %24, %25 : vector<8x4xf32>
    %cst_22 = arith.constant -2.000000e+01 : f32
    %cst_23 = arith.constant 2.000000e+00 : f32
    %27 = vector.broadcast %cst_22 : f32 to vector<8x4xf32>
    %28 = arith.maximumf %27, %26 : vector<8x4xf32>
    %29 = vector.broadcast %cst_23 : f32 to vector<8x4xf32>
    %30 = arith.minimumf %29, %28 : vector<8x4xf32>
    %31 = math.exp %30 : vector<8x4xf32>
    %32 = arith.mulf %31, %1 : vector<8x4xf32>
    %33 = arith.addf %22, %32 : vector<8x4xf32>
    %cst_24 = arith.constant -2.000000e+00 : f32
    %34 = vector.broadcast %cst_24 : f32 to vector<8x4xf32>
    %35 = arith.mulf %34, %33 : vector<8x4xf32>
    %cst_25 = arith.constant 0.000000e+00 : f32
    %36 = vector.broadcast %cst_25 : f32 to vector<8x4xf32>
    %37 = arith.maximumf %36, %35 : vector<8x4xf32>
    %38 = vector.broadcast %cst_25 : f32 to vector<8x4xf32>
    %39 = arith.subf %38, %35 : vector<8x4xf32>
    %40 = arith.cmpf one, %39, %39 : vector<8x4xf32>
    %41 = vector.broadcast %cst_25 : f32 to vector<8x4xf32>
    %42 = arith.addf %41, %35 : vector<8x4xf32>
    %43 = math.absf %39 : vector<8x4xf32>
    %cst_26 = arith.constant 0.000000e+00 : f32
    %44 = vector.broadcast %cst_26 : f32 to vector<8x4xf32>
    %45 = arith.subf %44, %43 : vector<8x4xf32>
    %46 = math.exp %45 : vector<8x4xf32>
    %47 = math.log1p %46 : vector<8x4xf32>
    %48 = arith.addf %37, %47 : vector<8x4xf32>
    %49 = arith.select %40, %42, %48 : vector<8x4xi1>, vector<8x4xf32>
    %50 = arith.mulf %1, %1 : vector<8x4xf32>
    %cst_27 = arith.constant -5.000000e-01 : f32
    %51 = vector.broadcast %cst_27 : f32 to vector<8x4xf32>
    %52 = arith.mulf %51, %50 : vector<8x4xf32>
    %53 = arith.subf %52, %30 : vector<8x4xf32>
    %cst_28 = arith.constant 6.28318548 : f32
    %54 = math.log %cst_28 : f32
    %cst_29 = arith.constant 5.000000e-01 : f32
    %55 = arith.mulf %cst_29, %54 : f32
    %56 = vector.broadcast %55 : f32 to vector<8x4xf32>
    %57 = arith.subf %53, %56 : vector<8x4xf32>
    %cst_30 = arith.constant 2.000000e+00 : f32
    %58 = math.log %cst_30 : f32
    %59 = vector.broadcast %58 : f32 to vector<8x4xf32>
    %60 = arith.subf %59, %33 : vector<8x4xf32>
    %61 = arith.subf %60, %49 : vector<8x4xf32>
    %cst_31 = arith.constant 2.000000e+00 : f32
    %62 = vector.broadcast %cst_31 : f32 to vector<8x4xf32>
    %63 = arith.mulf %62, %61 : vector<8x4xf32>
    %64 = arith.subf %57, %63 : vector<8x4xf32>
    %cst_32 = arith.constant dense<0.000000e+00> : vector<8xf32>
    %65 = vector.multi_reduction <add>, %64, %cst_32 [1] : vector<8x4xf32> to vector<8xf32>
    %66 = vector.shape_cast %65 : vector<8xf32> to vector<8x1xf32>
    %67 = math.tanh %33 : vector<8x4xf32>
    %68 = vector.broadcast %6 : vector<1x4xf32> to vector<8x4xf32>
    %69 = arith.mulf %68, %67 : vector<8x4xf32>
    %cst_33 = arith.constant 0.000000e+00 : f32
    %70 = vector.broadcast %cst_33 : f32 to vector<8x123xf32>
    %71 = tpu.concatenate %69, %66, %70 in 1 : vector<8x4xf32>, vector<8x1xf32>, vector<8x123xf32> -> vector<8x128xf32>
    %c0_34 = arith.constant 0 : index
    %c0_35 = arith.constant 0 : index
    %72 = vector.load %arg8[%c0_34, %c0_35] : memref<8x128xf32, #tpu.memory_space<vmem>>, vector<8x128xf32>
    tpu.vector_store %arg8[%c0_34, %c0_35], %71 {strides = array<i32>} : memref<8x128xf32, #tpu.memory_space<vmem>>, vector<8x128xf32>,
    return
  }
  func.func @transform_0(%arg0: i32) -> (i32, i32) {
    %c0_i32 = arith.constant 0 : i32
    %c0_i32_0 = arith.constant 0 : i32
    return %arg0, %c0_i32 : i32, i32
  }
  func.func @transform_1(%arg0: i32) -> (i32, i32) {
    %c0_i32 = arith.constant 0 : i32
    %c0_i32_0 = arith.constant 0 : i32
    return %arg0, %c0_i32 : i32, i32
  }
  func.func @transform_2(%arg0: i32) -> (i32, i32) {
    %c0_i32 = arith.constant 0 : i32
    %c0_i32_0 = arith.constant 0 : i32
    %c0_i32_1 = arith.constant 0 : i32
    return %c0_i32, %c0_i32_0 : i32, i32
  }
  func.func @transform_3(%arg0: i32) -> (i32, i32) {
    %c0_i32 = arith.constant 0 : i32
    %c0_i32_0 = arith.constant 0 : i32
    %c0_i32_1 = arith.constant 0 : i32
    return %c0_i32, %c0_i32_0 : i32, i32
  }
  func.func @transform_4(%arg0: i32) -> (i32, i32) {
    %c0_i32 = arith.constant 0 : i32
    %c0_i32_0 = arith.constant 0 : i32
    %c0_i32_1 = arith.constant 0 : i32
    return %c0_i32, %c0_i32_0 : i32, i32
  }
  func.func @transform_5(%arg0: i32) -> (i32, i32) {
    %c0_i32 = arith.constant 0 : i32
    %c0_i32_0 = arith.constant 0 : i32
    %c0_i32_1 = arith.constant 0 : i32
    return %c0_i32, %c0_i32_0 : i32, i32
  }
  func.func @transform_6(%arg0: i32) -> (i32, i32) {
    %c0_i32 = arith.constant 0 : i32
    %c0_i32_0 = arith.constant 0 : i32
    %c0_i32_1 = arith.constant 0 : i32
    return %c0_i32, %c0_i32_0 : i32, i32
  }
  func.func @transform_7(%arg0: i32) -> (i32, i32) {
    %c0_i32 = arith.constant 0 : i32
    %c0_i32_0 = arith.constant 0 : i32
    return %arg0, %c0_i32 : i32, i32
  }
}

</mosaic_0001>

<llo_original>
// kernel: tpu_custom_call.1
$region0: #{tpu_custom_call.1}
  #allocation0 [shape = 'u32[]', space=smem, size = 0x4, offset = 0x4, fixed_abs, tag = 'smem constant byte address 0x4 - core index']
  #allocation1 [shape = 'u32[72,128]{1,0:T(1,128)}', space=vmem, size = 0x9000, scoped, tag = 'internal scratch']
  %s0 = inlined_call_operand.vmem [shape: f32[8,16], index: 0, kind: input, shape index: {}]
  %s1 = inlined_call_operand.vmem [shape: f32[8,4], index: 1, kind: input, shape index: {}]
  %s2 = inlined_call_operand.vmem [shape: f32[16,32], index: 2, kind: input, shape index: {}]
  %s3 = inlined_call_operand.vmem [shape: f32[32,32], index: 3, kind: input, shape index: {}]
  %s4 = inlined_call_operand.vmem [shape: f32[32,4], index: 4, kind: input, shape index: {}]
  %s5 = inlined_call_operand.vmem [shape: f32[32,4], index: 5, kind: input, shape index: {}]
  %s6 = inlined_call_operand.vmem [shape: f32[8,32], index: 6, kind: input, shape index: {}]
  %s7 = inlined_call_operand.hbm [shape: f32[8,128], index: 7, kind: output, shape index: {}]
  %s8 = sld [smem:[#allocation0]]
  $region38: #{tpu_custom_call.1} parent=0
    _
  %s10 = ssub.s32 1, %s8
  %s11 = scalar_select 0, %s10, %s8
  $region1: #{tpu_custom_call.1} parent=0
    #allocation2 [shape = 'u8[4096]{0}', space=vmem, size = 0x1000, scoped, tag = 'output window, operand 0, single buffered']
    #allocation3 [shape = 's32[1]{0}', space=sflag, size = 0x4, scoped, tag = 'scoped memory for tpu_custom_call.1']
    %12 = vsyncpa [#allocation3], 0
    // Predicated region
    $region2: #{tpu_custom_call.1} parent=1 // pred_check
      _
    $region3: #{tpu_custom_call.1} parent=1 // pred_check_branch
      %14 = sbr.rel (0) target = $region5
    $region4: #{tpu_custom_call.1} parent=1 // pred_region
      _
    $region5: #{tpu_custom_call.1} parent=1 // pred_fallthru
      _
    // Predicated region
    $region6: #{tpu_custom_call.1} parent=1 // pred_check
      _
    $region7: #{tpu_custom_call.1} parent=1 // pred_check_branch
      %16 = sbr.rel (0) target = $region9
    $region8: #{tpu_custom_call.1} parent=1 // pred_region
      _
    $region9: #{tpu_custom_call.1} parent=1 // pred_fallthru
      _
    // Predicated region
    $region10: #{tpu_custom_call.1} parent=1 // pred_check
      _
    $region11: #{tpu_custom_call.1} parent=1 // pred_check_branch
      %18 = sbr.rel (0) target = $region13
    $region12: #{tpu_custom_call.1} parent=1 // pred_region
      _
    $region13: #{tpu_custom_call.1} parent=1 // pred_fallthru
      _
    // Predicated region
    $region14: #{tpu_custom_call.1} parent=1 // pred_check
      _
    $region15: #{tpu_custom_call.1} parent=1 // pred_check_branch
      %20 = sbr.rel (0) target = $region17
    $region16: #{tpu_custom_call.1} parent=1 // pred_region
      _
    $region17: #{tpu_custom_call.1} parent=1 // pred_fallthru
      _
    // Predicated region
    $region18: #{tpu_custom_call.1} parent=1 // pred_check
      _
    $region19: #{tpu_custom_call.1} parent=1 // pred_check_branch
      %22 = sbr.rel (0) target = $region21
    $region20: #{tpu_custom_call.1} parent=1 // pred_region
      _
    $region21: #{tpu_custom_call.1} parent=1 // pred_fallthru
      _
    // Predicated region
    $region22: #{tpu_custom_call.1} parent=1 // pred_check
      _
    $region23: #{tpu_custom_call.1} parent=1 // pred_check_branch
      %24 = sbr.rel (0) target = $region25
    $region24: #{tpu_custom_call.1} parent=1 // pred_region
      _
    $region25: #{tpu_custom_call.1} parent=1 // pred_fallthru
      _
    // Predicated region
    $region26: #{tpu_custom_call.1} parent=1 // pred_check
      _
    $region27: #{tpu_custom_call.1} parent=1 // pred_check_branch
      %26 = sbr.rel (0) target = $region29
    $region28: #{tpu_custom_call.1} parent=1 // pred_region
      _
    $region29: #{tpu_custom_call.1} parent=1 // pred_fallthru
      _
    %v27 = vld [vmem:[%s0] sm:$0xff]
    %v28 = vld [vmem:[%s1] sm:$0xff]
    %v29 = vld [vmem:[%s6] sm:$0x1]
    %v30 = vld [vmem:[%s6 + $0x1] sm:$0x1]
    %v31 = vld [vmem:[%s6 + $0x2] sm:$0x1]
    %v32 = vld [vmem:[%s6 + $0x3] sm:$0x1]
    %v33 = vld [vmem:[%s6 + $0x4] sm:$0x1]
    %v34 = vld [vmem:[%s2] sm:$0xff]
    %v35 = vld [vmem:[%s2 + $0x8] sm:$0xff]
    %v36 = vperm.slane %v29, 0
    %vm37 = vcmask 130048
    %v39 = vsel %vm37, %v27, 0
    %41 = vmatpush.msra.mxu0 0.0
    %42 = vmatpush.msra.mxu0 0.0
    %43 = vmatpush.msra.mxu0 0.0
    %44 = vmatpush.msra.mxu0 0.0
    %45 = vmatpush.msra.mxu0 0.0
    %46 = vmatpush.msra.mxu0 0.0
    %47 = vmatpush.msra.mxu0 0.0
    %48 = vmatpush.msra.mxu0 0.0
    %49 = vmatpush.msra.mxu0 0.0
    %50 = vmatpush.msra.mxu0 0.0
    %51 = vmatpush.msra.mxu0 0.0
    %52 = vmatpush.msra.mxu0 0.0
    %53 = vmatpush.msra.mxu0 0.0
    %54 = vmatpush.msra.mxu0 0.0
    %55 = vmatpush.msra.mxu0 %v35
    %56 = vmatpush.msra.mxu0 %v34
    %57 = vmatmul.f32.gmra.mxu0 %v39
    %v58 = vpop.f32.mrf.mxu0
    %v59 = vadd.f32 %v36, %v58
    %60 = vdwg.mxu0
    %v61 = vmax.f32 %v59, 0.0
    %v62 = vld [vmem:[%s3] sm:$0xff]
    %v63 = vld [vmem:[%s3 + $0x8] sm:$0xff]
    %v64 = vld [vmem:[%s3 + $0x10] sm:$0xff]
    %v65 = vld [vmem:[%s3 + $0x18] sm:$0xff]
    %v66 = vperm.slane %v30, 0
    %vm67 = vcmask 261120
    %v69 = vsel %vm67, %v61, 0
    %71 = vmatpush.msra.mxu0 0.0
    %72 = vmatpush.msra.mxu0 0.0
    %73 = vmatpush.msra.mxu0 0.0
    %74 = vmatpush.msra.mxu0 0.0
    %75 = vmatpush.msra.mxu0 0.0
    %76 = vmatpush.msra.mxu0 0.0
    %77 = vmatpush.msra.mxu0 0.0
    %78 = vmatpush.msra.mxu0 0.0
    %79 = vmatpush.msra.mxu0 0.0
    %80 = vmatpush.msra.mxu0 0.0
    %81 = vmatpush.msra.mxu0 0.0
    %82 = vmatpush.msra.mxu0 0.0
    %83 = vmatpush.msra.mxu0 %v65
    %84 = vmatpush.msra.mxu0 %v64
    %85 = vmatpush.msra.mxu0 %v63
    %86 = vmatpush.msra.mxu0 %v62
    %87 = vmatmul.f32.gmra.mxu0 %v69
    %v88 = vpop.f32.mrf.mxu0
    %v89 = vadd.f32 %v66, %v88
    %90 = vdwg.mxu0
    %v91 = vmax.f32 %v89, 0.0
    %v92 = vld [vmem:[%s4] sm:$0xff]
    %v93 = vld [vmem:[%s4 + $0x8] sm:$0xff]
    %v94 = vld [vmem:[%s4 + $0x10] sm:$0xff]
    %v95 = vld [vmem:[%s4 + $0x18] sm:$0xff]
    %v96 = vperm.slane %v31, 0
    %v98 = vsel %vm67, %v91, 0
    %100 = vmatpush.msra.mxu0 0.0
    %101 = vmatpush.msra.mxu0 0.0
    %102 = vmatpush.msra.mxu0 0.0
    %103 = vmatpush.msra.mxu0 0.0
    %104 = vmatpush.msra.mxu0 0.0
    %105 = vmatpush.msra.mxu0 0.0
    %106 = vmatpush.msra.mxu0 0.0
    %107 = vmatpush.msra.mxu0 0.0
    %108 = vmatpush.msra.mxu0 0.0
    %109 = vmatpush.msra.mxu0 0.0
    %110 = vmatpush.msra.mxu0 0.0
    %111 = vmatpush.msra.mxu0 0.0
    %112 = vmatpush.msra.mxu0 %v95
    %113 = vmatpush.msra.mxu0 %v94
    %114 = vmatpush.msra.mxu0 %v93
    %115 = vmatpush.msra.mxu0 %v92
    %116 = vmatmul.f32.gmra.mxu0 %v98
    %v117 = vpop.f32.mrf.mxu0
    %v118 = vadd.f32 %v96, %v117
    %119 = vdwg.mxu0
    %v120 = vld [vmem:[%s5] sm:$0xff]
    %v121 = vld [vmem:[%s5 + $0x8] sm:$0xff]
    %v122 = vld [vmem:[%s5 + $0x10] sm:$0xff]
    %v123 = vld [vmem:[%s5 + $0x18] sm:$0xff]
    %v124 = vperm.slane %v32, 0
    %125 = vmatpush.msra.mxu0 0.0
    %126 = vmatpush.msra.mxu0 0.0
    %127 = vmatpush.msra.mxu0 0.0
    %128 = vmatpush.msra.mxu0 0.0
    %129 = vmatpush.msra.mxu0 0.0
    %130 = vmatpush.msra.mxu0 0.0
    %131 = vmatpush.msra.mxu0 0.0
    %132 = vmatpush.msra.mxu0 0.0
    %133 = vmatpush.msra.mxu0 0.0
    %134 = vmatpush.msra.mxu0 0.0
    %135 = vmatpush.msra.mxu0 0.0
    %136 = vmatpush.msra.mxu0 0.0
    %137 = vmatpush.msra.mxu0 %v123
    %138 = vmatpush.msra.mxu0 %v122
    %139 = vmatpush.msra.mxu0 %v121
    %140 = vmatpush.msra.mxu0 %v120
    %141 = vmatmul.f32.gmra.mxu0 %v98
    %v142 = vpop.f32.mrf.mxu0
    %v143 = vadd.f32 %v124, %v142
    %144 = vdwg.mxu0
    %v145 = vmax.f32 %v143, -20.0
    %v146 = vmin.f32 %v145, 2.0
    %v147 = vmul.f32 %v146, 1.442695
    %v148 = vpow.pop %v147
    %v149 = vmul.f32 %v148, %v28
    %v150 = vadd.f32 %v118, %v149
    %v151 = vmul.f32 %v150, -2.0
    %v152 = vmax.f32 %v151, 0.0
    %v153 = vsub.f32 0.0, %v151
    %vm154 = vcmp.ne.f32.partialorder %v153, %v153
    %v155 = vadd.f32 %v151, 0.0
    %v156 = vand.u32 2147483647, %v153
    %v157 = vsub.f32 0.0, %v156
    %v158 = vmul.f32 %v157, 1.442695
    %v159 = vpow.pop %v158
    %v160 = vadd.f32 %v159, 1.0
    %v161 = vlog2.pop %v160
    %v162 = vmul.f32 %v161, 0.6931472
    %v163 = vmul.f32 -0.5, %v159
    %v164 = vadd.f32 %v163, 1.0
    %v165 = vmul.f32 %v164, %v159
    %v166 = vand.u32 2147483647, %v159
    %vm167 = vcmp.lt.f32.partialorder %v166, 0.0004427343
    %v168 = vsel %vm167, %v165, %v162
    %v169 = vadd.f32 %v152, %v168
    %v170 = vsel %vm154, %v155, %v169
    %v171 = vmul.f32 %v28, %v28
    %v172 = vmul.f32 %v171, -0.5
    %v173 = vsub.f32 %v172, %v146
    %v174 = vsub.f32 %v173, 0.9189385
    %v175 = vsub.f32 0.6931472, %v150
    %v176 = vsub.f32 %v175, %v170
    %v177 = vmul.f32 %v176, 2.0
    %v178 = vsub.f32 %v174, %v177
    %vm179 = vcmask 31744
    %v180 = vsel %vm179, %v178, 0.0
    %181 = vadd.xlane.f32.xlu0 %v180
    %v182 = vpop.xlane.xlu0 %181
    %v183 = vtanh.pop %v150
    %v184 = vperm.slane %v33, 0
    %v185 = vmul.f32 %v184, %v183
    %v186 = vsel %vm179, %v185, %v182
    %vm187 = vcmask 39936
    %v188 = vsel %vm187, %v186, 0.0
    %189 = vst [vmem:[#allocation2] sm:$0xff] %v188
    // Predicated region
    $region30: #{tpu_custom_call.1} parent=1 // pred_check
      _
    $region31: #{tpu_custom_call.1} parent=1 // pred_check_branch
      %191 = sbr.rel (0) target = $region33
    $region32: #{tpu_custom_call.1} parent=1 // pred_region
      %193 = vsyncadd [#allocation3], 0
      %s195 = sshll.u32 [#allocation2], 4
      %s196 = int_to_ptr.vmem [resolvable:$true] %s195
      %s197 = sshll.u32 %s7, 4
      %s198 = int_to_ptr.hbm [resolvable:$true] %s197
      %200 = dma.vmem_to_hbm [thread:$0]  %s196, 128, %s198, [#allocation3]
    $region33: #{tpu_custom_call.1} parent=1 // pred_fallthru
      _
    // Predicated region
    $region34: #{tpu_custom_call.1} parent=1 // pred_check
      _
    $region35: #{tpu_custom_call.1} parent=1 // pred_check_branch
      %202 = sbr.rel (0) target = $region37
    $region36: #{tpu_custom_call.1} parent=1 // pred_region
      %204 = dma.done [#allocation3], 128
    $region37: #{tpu_custom_call.1} parent=1 // pred_fallthru
      _
    %205 = vsyncpa [#allocation3], 1

</llo_original>
